<compile_context>
chip_gen: v5e
topology: v5e:2x2
jax: 0.10.0
libtpu: 0.0.40
codegen_flags: <defaults>
</compile_context>

<pallas_src>
import functools
import math

import jax
import jax.numpy as jnp
from jax.experimental import pallas as pl
from jax.experimental.pallas import tpu as pltpu

_EPS = 1e-15        # geoopt-style clamp_min epsilon
_BALL_EPS = 4e-3    # geoopt float32 ball-boundary epsilon for projection


# ------------------------------ shared scalar math ------------------------------

def _artanh(u):
    u = jnp.clip(u, -1.0 + 1e-7, 1.0 - 1e-7)
    return 0.5 * jnp.log((1.0 + u) / (1.0 - u))


# ------------------------------ in-kernel epilogue -------------------------------
# All divisions happen on (TM,1) columns via pl.reciprocal; the (TM,H)-wide work
# is multiplies/adds and the unavoidable row reductions.

def _madd_project(x, x_sq, y, y_sq, c):
    """mobius_add(x, y) followed by ball projection.  Returns (z, ||z||^2)."""
    xy = jnp.sum(x * y, axis=-1, keepdims=True)
    num = (1.0 + 2.0 * c * xy + c * y_sq) * x + (1.0 - c * x_sq) * y
    den = 1.0 + 2.0 * c * xy + (c * c) * x_sq * y_sq
    z = num * pl.reciprocal(jnp.maximum(den, _EPS))
    z_sq = jnp.sum(z * z, axis=-1, keepdims=True)
    z_norm = jnp.maximum(jnp.sqrt(z_sq), _EPS)
    maxnorm = (1.0 - _BALL_EPS) / math.sqrt(c)
    s = jnp.where(z_norm > maxnorm, maxnorm * pl.reciprocal(z_norm), 1.0)
    return z * s, z_sq * s * s


def _hyperbolic_epilogue(mv, x_sq, res, b, b_sq, c):
    """mv = x @ W^T (f32), x_sq = ||x||^2 column, res = residual tile (f32),
    b = (1,H) f32 bias point, b_sq = ||b||^2 scalar (hoisted to the wrapper)."""
    sqrt_c = math.sqrt(c)
    maxnorm = (1.0 - _BALL_EPS) / sqrt_c

    x_norm = jnp.maximum(jnp.sqrt(x_sq), _EPS)
    mv_sq = jnp.sum(mv * mv, axis=-1, keepdims=True)
    mv_norm = jnp.maximum(jnp.sqrt(mv_sq), _EPS)

    # Mobius matvec: tanh(|Wx|/|x| * artanh(sqrt(c)|x|)) * Wx / (sqrt(c)|Wx|),
    # expressed as a single non-negative (TM,1) scale column applied to mv.
    ratio = mv_norm * pl.reciprocal(x_norm)
    s_mv = jnp.tanh(ratio * _artanh(sqrt_c * x_norm)) * pl.reciprocal(mv_norm * sqrt_c)
    # ball projection of h = s_mv * mv, tracked on the norm column (s_mv >= 0)
    h_norm = s_mv * mv_norm
    s_prj = jnp.where(h_norm > maxnorm,
                      maxnorm * pl.reciprocal(jnp.maximum(h_norm, _EPS)), 1.0)
    h = mv * (s_mv * s_prj)
    h_sq = (h_norm * s_prj) ** 2

    # Mobius bias add (bias is a point on the ball) + projection.
    h, h_sq = _madd_project(h, h_sq, b, b_sq, c)

    # TODO(synk): training-mode mobius dropout (logmap0 -> random mask -> expmap0)
    # is not implemented; eval-mode dropout is the identity on the ball.

    # Hyperbolic residual connection: mobius_add(input_tensor, h) + projection.
    res_sq = jnp.sum(res * res, axis=-1, keepdims=True)
    out, _ = _madd_project(res, res_sq, h, h_sq, c)
    return out


# ----------------------------------- kernels -----------------------------------

def _resident_kernel(x_ref, res_ref, wt_ref, b_ref, bsq_ref, o_ref, *, c):
    # x_ref:(TM,H) res_ref:(TM,H) wt_ref:(H,H) in (in,out) layout, VMEM-resident.
    x = x_ref[...]                                   # native dtype feeds the MXU
    mv = jnp.dot(x, wt_ref[...], preferred_element_type=jnp.float32)
    xf = x.astype(jnp.float32)
    x_sq = jnp.sum(xf * xf, axis=-1, keepdims=True)
    out = _hyperbolic_epilogue(mv, x_sq, res_ref[...].astype(jnp.float32),
                               b_ref[...], bsq_ref[0, 0], c)
    o_ref[...] = out.astype(o_ref.dtype)


def _streamed_kernel(x_ref, res_ref, wt_ref, b_ref, bsq_ref, o_ref,
                     acc_ref, xsq_ref, *, c):
    # Fallback for weights too large to hold resident in VMEM: weight streamed in
    # (TK,H) slabs over the K grid axis into an f32 accumulator.
    k = pl.program_id(1)

    @pl.when(k == 0)
    def _init():
        acc_ref[...] = jnp.zeros_like(acc_ref)
        xsq_ref[...] = jnp.zeros_like(xsq_ref)

    x = x_ref[...]
    acc_ref[...] += jnp.dot(x, wt_ref[...], preferred_element_type=jnp.float32)
    xf = x.astype(jnp.float32)
    xsq_ref[...] += jnp.sum(xf * xf, axis=-1, keepdims=True)

    @pl.when(k == pl.num_programs(1) - 1)
    def _finalize():
        out = _hyperbolic_epilogue(acc_ref[...], xsq_ref[...],
                                   res_ref[...].astype(jnp.float32),
                                   b_ref[...], bsq_ref[0, 0], c)
        o_ref[...] = out.astype(o_ref.dtype)


# ----------------------------------- wrapper -----------------------------------

def _round_up(v, m):
    return ((v + m - 1) // m) * m


def _pick_tile_k(h, requested=512):
    if h <= requested:
        return h
    for tk in (requested, 256, 128):
        if h % tk == 0:
            return tk
    return h  # full-extent block is always legal


def _vmem_budget_bytes():
    # Generation-aware cap: ~75% of physical per-TensorCore VMEM
    # (~96 MiB on v5e/v6e, ~48 MiB on v7x); conservative 48 MiB if query fails.
    cap = 64 * 2 ** 20
    try:
        cap = int(getattr(pltpu.get_tpu_info(), "vmem_capacity_bytes", cap))
    except Exception:
        pass
    return max(32 * 2 ** 20, (cap * 3) // 4)


def multi_head_attention_output(hidden_states, input_tensor, weight, bias, *,
                                curvature=1.0, tile_rows=512):
    """hidden_states, input_tensor: [B,S,H] points on the Poincare ball;
    weight: [H,H] in PyTorch (out,in) layout; bias: [H] point on the ball."""
    B, S, H = hidden_states.shape
    rows = B * S
    c = float(curvature)

    x2 = hidden_states.reshape(rows, H)
    r2 = input_tensor.reshape(rows, H)
    # One-time wrapper-side layout work (single XLA ops, not per-tile):
    #   * weight transposed to (in,out) so the MXU sees a native contraction
    #   * bias cast to f32, ||b||^2 precomputed (hoisted out of the kernel)
    w_t = jnp.transpose(weight)                               # (in, out)
    b_row = bias.reshape(1, H).astype(jnp.float32)
    b_sq = jnp.sum(b_row * b_row, axis=-1, keepdims=True)     # (1,1) f32 -> SMEM

    act_isz = jnp.dtype(x2.dtype).itemsize
    res_isz = jnp.dtype(r2.dtype).itemsize
    out_isz = act_isz
    w_isz = jnp.dtype(w_t.dtype).itemsize
    budget = _vmem_budget_bytes()

    # Row tile: biggest that fits, split so both v7x TensorCores get work.
    tm = max(8, min(_round_up(tile_rows, 8), _round_up(rows, 8)))
    if rows >= 512 and pl.cdiv(rows, tm) < 2:
        tm = _round_up(pl.cdiv(rows, 2), 8)

    def resident_vmem(tm_):
        return (H * H * w_isz                                   # weight, single-buffered
                + 2 * tm_ * H * (act_isz + res_isz + out_isz)   # double-buffered row tiles
                + 2 * tm_ * H * 4                               # f32 epilogue temporaries
                + 2 * H * 4 + 4096)                             # bias + slack

    tm_res = tm
    while tm_res > 64 and resident_vmem(tm_res) > budget:
        tm_res = max(64, _round_up(tm_res // 2, 8))

    bsq_spec = pl.BlockSpec(memory_space=pltpu.MemorySpace.SMEM)

    if resident_vmem(tm_res) <= budget:
        # -------- resident-weight path: weight DMA'd exactly once --------
        tm = tm_res
        try:
            w_spec = pl.BlockSpec((H, H), lambda i: (0, 0),
                                  pipeline_mode=pl.Buffered(1))
        except (AttributeError, TypeError):   # older jax without pipeline_mode
            w_spec = pl.BlockSpec((H, H), lambda i: (0, 0))
        grid = (pl.cdiv(rows, tm),)
        in_specs = [
            pl.BlockSpec((tm, H), lambda i: (i, 0)),            # hidden_states rows
            pl.BlockSpec((tm, H), lambda i: (i, 0)),            # residual rows
            w_spec,                                             # resident (in,out) weight
            pl.BlockSpec((1, H), lambda i: (0, 0)),             # bias
            bsq_spec,                                           # ||b||^2 scalar
        ]
        out_specs = pl.BlockSpec((tm, H), lambda i: (i, 0))
        scratch_shapes = []
        dim_sem = ("parallel",)
        kernel_fn = functools.partial(_resident_kernel, c=c)
    else:
        # -------- streamed fallback: (TK,H) weight slabs over a K axis --------
        tk = _pick_tile_k(H)

        def streamed_vmem(tm_, tk_):
            return (2 * tk_ * H * w_isz + 2 * tm_ * tk_ * act_isz
                    + 2 * tm_ * H * (res_isz + out_isz)
                    + tm_ * H * 4 + tm_ * 4
                    + 2 * tm_ * H * 4 + 2 * H * 4 + 4096)

        while tm > 64 and streamed_vmem(tm, tk) > budget:
            tm = max(64, _round_up(tm // 2, 8))
        grid = (pl.cdiv(rows, tm), H // tk)
        in_specs = [
            pl.BlockSpec((tm, tk), lambda i, k: (i, k)),        # hidden_states tile
            pl.BlockSpec((tm, H), lambda i, k: (i, 0)),         # residual rows
            pl.BlockSpec((tk, H), lambda i, k: (k, 0)),         # pre-transposed weight slab
            pl.BlockSpec((1, H), lambda i, k: (0, 0)),          # bias
            bsq_spec,                                           # ||b||^2 scalar
        ]
        out_specs = pl.BlockSpec((tm, H), lambda i, k: (i, 0))
        scratch_shapes = [pltpu.VMEM((tm, H), jnp.float32),     # W x accumulator
                          pltpu.VMEM((tm, 1), jnp.float32)]     # ||x||^2 accumulator
        dim_sem = ("parallel", "arbitrary")
        kernel_fn = functools.partial(_streamed_kernel, c=c)

    out = pl.pallas_call(
        kernel_fn,
        out_shape=jax.ShapeDtypeStruct((rows, H), hidden_states.dtype),
        grid_spec=pltpu.PrefetchScalarGridSpec(
            num_scalar_prefetch=0,
            grid=grid,
            in_specs=in_specs,
            out_specs=out_specs,
            scratch_shapes=scratch_shapes,
        ),
        compiler_params=pltpu.CompilerParams(
            dimension_semantics=dim_sem,
            vmem_limit_bytes=int(budget),
        ),
    )(x2, r2, w_t, b_row, b_sq)

    return out.reshape(B, S, H)


# ---------------------------------- reference ----------------------------------

def _l2norm(x):
    return jnp.maximum(jnp.sqrt(jnp.sum(x * x, axis=-1, keepdims=True)), _EPS)


def _project_ball(x, c):
    maxnorm = (1.0 - _BALL_EPS) / math.sqrt(c)
    norm = _l2norm(x)
    return jnp.where(norm > maxnorm, x / norm * maxnorm, x)


def _mobius_add(x, y, c):
    x2 = jnp.sum(x * x, axis=-1, keepdims=True)
    y2 = jnp.sum(y * y, axis=-1, keepdims=True)
    xy = jnp.sum(x * y, axis=-1, keepdims=True)
    num = (1.0 + 2.0 * c * xy + c * y2) * x + (1.0 - c * x2) * y
    den = 1.0 + 2.0 * c * xy + (c * c) * x2 * y2
    return num / jnp.maximum(den, _EPS)


def _reference(hidden_states, input_tensor, weight, bias, curvature=1.0):
    c = float(curvature)
    sqrt_c = math.sqrt(c)
    x = hidden_states.astype(jnp.float32)
    mx = jnp.einsum("bsh,oh->bso", x, weight.astype(jnp.float32))
    x_norm = _l2norm(x)
    mx_norm = _l2norm(mx)
    h = jnp.tanh(mx_norm / x_norm * _artanh(sqrt_c * x_norm)) * mx / (mx_norm * sqrt_c)
    h = _project_ball(h, c)
    b = bias.reshape(1, 1, -1).astype(jnp.float32)
    h = _project_ball(_mobius_add(h, b, c), c)
    out = _project_ball(_mobius_add(input_tensor.astype(jnp.float32), h, c), c)
    return out.astype(hidden_states.dtype)


if __name__ == "__main__":
    B, S, H = 2, 8, 128
    c = 1.0

    key = jax.random.PRNGKey(0)
    k1, k2, k3, k4 = jax.random.split(key, 4)

    def _on_ball(k, shape, scale):
        v = jax.random.normal(k, shape, dtype=jnp.float32)
        n = jnp.sqrt(jnp.sum(v * v, axis=-1, keepdims=True))
        return scale * v / (1.0 + n)          # norm strictly < scale < 1/sqrt(c)

    hidden_states = _on_ball(k1, (B, S, H), 0.4)
    input_tensor = _on_ball(k2, (B, S, H), 0.4)
    weight = jax.random.normal(k3, (H, H), dtype=jnp.float32) / math.sqrt(H)   # (out, in)
    bias = _on_ball(k4, (1, H), 0.05).reshape(H)

    out = multi_head_attention_output(hidden_states, input_tensor, weight, bias, curvature=c)
    out = jax.block_until_ready(out)

    ref = _reference(hidden_states, input_tensor, weight, bias, curvature=c)
    assert out.shape == (B, S, H)
    assert bool(jnp.allclose(out, ref, atol=2e-3, rtol=2e-3)), "mismatch vs reference"

    print("KERNEL_OK")
</pallas_src>

<mosaic_0001>
module attributes {stable_mosaic.version = 11 : i64} {
  func.func @_resident_kernel(%arg0: i32, %arg1: memref<16x128xf32, #tpu.memory_space<vmem>>, %arg2: memref<16x128xf32, #tpu.memory_space<vmem>>, %arg3: memref<128x128xf32, #tpu.memory_space<vmem>>, %arg4: memref<1x128xf32, #tpu.memory_space<vmem>>, %arg5: memref<1x1xf32, #tpu.memory_space<smem>>, %arg6: memref<16x128xf32, #tpu.memory_space<vmem>>) attributes {dimension_semantics = [#tpu.dimension_semantics<parallel>], iteration_bounds = array<i64: 1>, scalar_prefetch = 0 : i64, scratch_operands = 0 : i64, tpu.core_type = #tpu.core_type<tc>, window_params = [{transform_indices = @transform_0, window_bounds = array<i64: 16, 128>}, {transform_indices = @transform_1, window_bounds = array<i64: 16, 128>}, {pipeline_mode = #tpu.pipeline_mode<synchronous>, transform_indices = @transform_2, window_bounds = array<i64: 128, 128>}, {pipeline_mode = #tpu.pipeline_mode<synchronous>, transform_indices = @transform_3, window_bounds = array<i64: 1, 128>}, {transform_indices = @transform_4, window_bounds = array<i64: 1, 1>}, {transform_indices = @transform_5, window_bounds = array<i64: 16, 128>}]} {
    %c0 = arith.constant 0 : index
    %c0_0 = arith.constant 0 : index
    %0 = vector.load %arg1[%c0, %c0_0] : memref<16x128xf32, #tpu.memory_space<vmem>>, vector<16x128xf32>
    %c0_1 = arith.constant 0 : index
    %c0_2 = arith.constant 0 : index
    %1 = vector.load %arg3[%c0_1, %c0_2] : memref<128x128xf32, #tpu.memory_space<vmem>>, vector<128x128xf32>
    %cst = arith.constant dense<0.000000e+00> : vector<16x128xf32>
    %2 = tpu.matmul %0, %1, %cst {dimension_numbers = #tpu.dot_dimension_numbers<[1], [0], [0], [1], [0, 0, 1, 1], [], []>} : vector<16x128xf32>, vector<128x128xf32>, vector<16x128xf32> -> vector<16x128xf32>
    %3 = arith.mulf %0, %0 : vector<16x128xf32>
    %cst_3 = arith.constant dense<0.000000e+00> : vector<16xf32>
    %4 = vector.multi_reduction <add>, %3, %cst_3 [1] : vector<16x128xf32> to vector<16xf32>
    %5 = vector.shape_cast %4 : vector<16xf32> to vector<16x1xf32>
    %c0_4 = arith.constant 0 : index
    %c0_5 = arith.constant 0 : index
    %6 = vector.load %arg2[%c0_4, %c0_5] : memref<16x128xf32, #tpu.memory_space<vmem>>, vector<16x128xf32>
    %c0_6 = arith.constant 0 : index
    %c0_7 = arith.constant 0 : index
    %7 = vector.load %arg4[%c0_6, %c0_7] : memref<1x128xf32, #tpu.memory_space<vmem>>, vector<1x128xf32>
    %c0_8 = arith.constant 0 : index
    %c0_9 = arith.constant 0 : index
    %8 = memref.load %arg5[%c0_8, %c0_9] : memref<1x1xf32, #tpu.memory_space<smem>>
    %9 = math.sqrt %5 : vector<16x1xf32>
    %cst_10 = arith.constant 1.000000e-15 : f32
    %10 = vector.broadcast %cst_10 : f32 to vector<16x1xf32>
    %11 = arith.maximumf %9, %10 : vector<16x1xf32>
    %12 = arith.mulf %2, %2 : vector<16x128xf32>
    %cst_11 = arith.constant dense<0.000000e+00> : vector<16xf32>
    %13 = vector.multi_reduction <add>, %12, %cst_11 [1] : vector<16x128xf32> to vector<16xf32>
    %14 = vector.shape_cast %13 : vector<16xf32> to vector<16x1xf32>
    %15 = math.sqrt %14 : vector<16x1xf32>
    %cst_12 = arith.constant 1.000000e-15 : f32
    %16 = vector.broadcast %cst_12 : f32 to vector<16x1xf32>
    %17 = arith.maximumf %15, %16 : vector<16x1xf32>
    %18 = tpu.reciprocal %11 : vector<16x1xf32> -> vector<16x1xf32>
    %19 = arith.mulf %17, %18 : vector<16x1xf32>
    %cst_13 = arith.constant 1.000000e+00 : f32
    %20 = vector.broadcast %cst_13 : f32 to vector<16x1xf32>
    %21 = arith.mulf %20, %11 : vector<16x1xf32>
    %cst_14 = arith.constant -0.99999988 : f32
    %cst_15 = arith.constant 0.99999988 : f32
    %22 = vector.broadcast %cst_14 : f32 to vector<16x1xf32>
    %23 = arith.maximumf %22, %21 : vector<16x1xf32>
    %24 = vector.broadcast %cst_15 : f32 to vector<16x1xf32>
    %25 = arith.minimumf %24, %23 : vector<16x1xf32>
    %cst_16 = arith.constant 1.000000e+00 : f32
    %26 = vector.broadcast %cst_16 : f32 to vector<16x1xf32>
    %27 = arith.addf %26, %25 : vector<16x1xf32>
    %cst_17 = arith.constant 1.000000e+00 : f32
    %28 = vector.broadcast %cst_17 : f32 to vector<16x1xf32>
    %29 = arith.subf %28, %25 : vector<16x1xf32>
    %30 = arith.divf %27, %29 : vector<16x1xf32>
    %31 = math.log %30 : vector<16x1xf32>
    %cst_18 = arith.constant 5.000000e-01 : f32
    %32 = vector.broadcast %cst_18 : f32 to vector<16x1xf32>
    %33 = arith.mulf %32, %31 : vector<16x1xf32>
    %34 = arith.mulf %19, %33 : vector<16x1xf32>
    %35 = math.tanh %34 : vector<16x1xf32>
    %cst_19 = arith.constant 1.000000e+00 : f32
    %36 = vector.broadcast %cst_19 : f32 to vector<16x1xf32>
    %37 = arith.mulf %17, %36 : vector<16x1xf32>
    %38 = tpu.reciprocal %37 : vector<16x1xf32> -> vector<16x1xf32>
    %39 = arith.mulf %35, %38 : vector<16x1xf32>
    %40 = arith.mulf %39, %17 : vector<16x1xf32>
    %cst_20 = arith.constant 0.995999991 : f32
    %41 = vector.broadcast %cst_20 : f32 to vector<16x1xf32>
    %42 = arith.cmpf ogt, %40, %41 : vector<16x1xf32>
    %cst_21 = arith.constant 1.000000e-15 : f32
    %43 = vector.broadcast %cst_21 : f32 to vector<16x1xf32>
    %44 = arith.maximumf %40, %43 : vector<16x1xf32>
    %45 = tpu.reciprocal %44 : vector<16x1xf32> -> vector<16x1xf32>
    %cst_22 = arith.constant 0.995999991 : f32
    %46 = vector.broadcast %cst_22 : f32 to vector<16x1xf32>
    %47 = arith.mulf %46, %45 : vector<16x1xf32>
    %cst_23 = arith.constant 1.000000e+00 : f32
    %48 = vector.broadcast %cst_23 : f32 to vector<16x1xf32>
    %49 = arith.select %42, %47, %48 : vector<16x1xi1>, vector<16x1xf32>
    %50 = arith.mulf %39, %49 : vector<16x1xf32>
    %51 = vector.broadcast %50 : vector<16x1xf32> to vector<16x128xf32>
    %52 = arith.mulf %2, %51 : vector<16x128xf32>
    %53 = arith.mulf %40, %49 : vector<16x1xf32>
    %54 = arith.mulf %53, %53 : vector<16x1xf32>
    %55 = vector.broadcast %7 : vector<1x128xf32> to vector<16x128xf32>
    %56 = arith.mulf %52, %55 : vector<16x128xf32>
    %cst_24 = arith.constant dense<0.000000e+00> : vector<16xf32>
    %57 = vector.multi_reduction <add>, %56, %cst_24 [1] : vector<16x128xf32> to vector<16xf32>
    %58 = vector.shape_cast %57 : vector<16xf32> to vector<16x1xf32>
    %cst_25 = arith.constant 2.000000e+00 : f32
    %59 = vector.broadcast %cst_25 : f32 to vector<16x1xf32>
    %60 = arith.mulf %59, %58 : vector<16x1xf32>
    %cst_26 = arith.constant 1.000000e+00 : f32
    %61 = vector.broadcast %cst_26 : f32 to vector<16x1xf32>
    %62 = arith.addf %61, %60 : vector<16x1xf32>
    %cst_27 = arith.constant 1.000000e+00 : f32
    %63 = arith.mulf %cst_27, %8 : f32
    %64 = vector.broadcast %63 : f32 to vector<16x1xf32>
    %65 = arith.addf %62, %64 : vector<16x1xf32>
    %66 = vector.broadcast %65 : vector<16x1xf32> to vector<16x128xf32>
    %67 = arith.mulf %66, %52 : vector<16x128xf32>
    %cst_28 = arith.constant 1.000000e+00 : f32
    %68 = vector.broadcast %cst_28 : f32 to vector<16x1xf32>
    %69 = arith.mulf %68, %54 : vector<16x1xf32>
    %cst_29 = arith.constant 1.000000e+00 : f32
    %70 = vector.broadcast %cst_29 : f32 to vector<16x1xf32>
    %71 = arith.subf %70, %69 : vector<16x1xf32>
    %72 = vector.broadcast %71 : vector<16x1xf32> to vector<16x128xf32>
    %73 = vector.broadcast %7 : vector<1x128xf32> to vector<16x128xf32>
    %74 = arith.mulf %72, %73 : vector<16x128xf32>
    %75 = arith.addf %67, %74 : vector<16x128xf32>
    %cst_30 = arith.constant 2.000000e+00 : f32
    %76 = vector.broadcast %cst_30 : f32 to vector<16x1xf32>
    %77 = arith.mulf %76, %58 : vector<16x1xf32>
    %cst_31 = arith.constant 1.000000e+00 : f32
    %78 = vector.broadcast %cst_31 : f32 to vector<16x1xf32>
    %79 = arith.addf %78, %77 : vector<16x1xf32>
    %cst_32 = arith.constant 1.000000e+00 : f32
    %80 = vector.broadcast %cst_32 : f32 to vector<16x1xf32>
    %81 = arith.mulf %80, %54 : vector<16x1xf32>
    %82 = vector.broadcast %8 : f32 to vector<16x1xf32>
    %83 = arith.mulf %81, %82 : vector<16x1xf32>
    %84 = arith.addf %79, %83 : vector<16x1xf32>
    %cst_33 = arith.constant 1.000000e-15 : f32
    %85 = vector.broadcast %cst_33 : f32 to vector<16x1xf32>
    %86 = arith.maximumf %84, %85 : vector<16x1xf32>
    %87 = tpu.reciprocal %86 : vector<16x1xf32> -> vector<16x1xf32>
    %88 = vector.broadcast %87 : vector<16x1xf32> to vector<16x128xf32>
    %89 = arith.mulf %75, %88 : vector<16x128xf32>
    %90 = arith.mulf %89, %89 : vector<16x128xf32>
    %cst_34 = arith.constant dense<0.000000e+00> : vector<16xf32>
    %91 = vector.multi_reduction <add>, %90, %cst_34 [1] : vector<16x128xf32> to vector<16xf32>
    %92 = vector.shape_cast %91 : vector<16xf32> to vector<16x1xf32>
    %93 = math.sqrt %92 : vector<16x1xf32>
    %cst_35 = arith.constant 1.000000e-15 : f32
    %94 = vector.broadcast %cst_35 : f32 to vector<16x1xf32>
    %95 = arith.maximumf %93, %94 : vector<16x1xf32>
    %cst_36 = arith.constant 0.995999991 : f32
    %96 = vector.broadcast %cst_36 : f32 to vector<16x1xf32>
    %97 = arith.cmpf ogt, %95, %96 : vector<16x1xf32>
    %98 = tpu.reciprocal %95 : vector<16x1xf32> -> vector<16x1xf32>
    %cst_37 = arith.constant 0.995999991 : f32
    %99 = vector.broadcast %cst_37 : f32 to vector<16x1xf32>
    %100 = arith.mulf %99, %98 : vector<16x1xf32>
    %cst_38 = arith.constant 1.000000e+00 : f32
    %101 = vector.broadcast %cst_38 : f32 to vector<16x1xf32>
    %102 = arith.select %97, %100, %101 : vector<16x1xi1>, vector<16x1xf32>
    %103 = vector.broadcast %102 : vector<16x1xf32> to vector<16x128xf32>
    %104 = arith.mulf %89, %103 : vector<16x128xf32>
    %105 = arith.mulf %92, %102 : vector<16x1xf32>
    %106 = arith.mulf %105, %102 : vector<16x1xf32>
    %107 = arith.mulf %6, %6 : vector<16x128xf32>
    %cst_39 = arith.constant dense<0.000000e+00> : vector<16xf32>
    %108 = vector.multi_reduction <add>, %107, %cst_39 [1] : vector<16x128xf32> to vector<16xf32>
    %109 = vector.shape_cast %108 : vector<16xf32> to vector<16x1xf32>
    %110 = arith.mulf %6, %104 : vector<16x128xf32>
    %cst_40 = arith.constant dense<0.000000e+00> : vector<16xf32>
    %111 = vector.multi_reduction <add>, %110, %cst_40 [1] : vector<16x128xf32> to vector<16xf32>
    %112 = vector.shape_cast %111 : vector<16xf32> to vector<16x1xf32>
    %cst_41 = arith.constant 2.000000e+00 : f32
    %113 = vector.broadcast %cst_41 : f32 to vector<16x1xf32>
    %114 = arith.mulf %113, %112 : vector<16x1xf32>
    %cst_42 = arith.constant 1.000000e+00 : f32
    %115 = vector.broadcast %cst_42 : f32 to vector<16x1xf32>
    %116 = arith.addf %115, %114 : vector<16x1xf32>
    %cst_43 = arith.constant 1.000000e+00 : f32
    %117 = vector.broadcast %cst_43 : f32 to vector<16x1xf32>
    %118 = arith.mulf %117, %106 : vector<16x1xf32>
    %119 = arith.addf %116, %118 : vector<16x1xf32>
    %120 = vector.broadcast %119 : vector<16x1xf32> to vector<16x128xf32>
    %121 = arith.mulf %120, %6 : vector<16x128xf32>
    %cst_44 = arith.constant 1.000000e+00 : f32
    %122 = vector.broadcast %cst_44 : f32 to vector<16x1xf32>
    %123 = arith.mulf %122, %109 : vector<16x1xf32>
    %cst_45 = arith.constant 1.000000e+00 : f32
    %124 = vector.broadcast %cst_45 : f32 to vector<16x1xf32>
    %125 = arith.subf %124, %123 : vector<16x1xf32>
    %126 = vector.broadcast %125 : vector<16x1xf32> to vector<16x128xf32>
    %127 = arith.mulf %126, %104 : vector<16x128xf32>
    %128 = arith.addf %121, %127 : vector<16x128xf32>
    %cst_46 = arith.constant 2.000000e+00 : f32
    %129 = vector.broadcast %cst_46 : f32 to vector<16x1xf32>
    %130 = arith.mulf %129, %112 : vector<16x1xf32>
    %cst_47 = arith.constant 1.000000e+00 : f32
    %131 = vector.broadcast %cst_47 : f32 to vector<16x1xf32>
    %132 = arith.addf %131, %130 : vector<16x1xf32>
    %cst_48 = arith.constant 1.000000e+00 : f32
    %133 = vector.broadcast %cst_48 : f32 to vector<16x1xf32>
    %134 = arith.mulf %133, %109 : vector<16x1xf32>
    %135 = arith.mulf %134, %106 : vector<16x1xf32>
    %136 = arith.addf %132, %135 : vector<16x1xf32>
    %cst_49 = arith.constant 1.000000e-15 : f32
    %137 = vector.broadcast %cst_49 : f32 to vector<16x1xf32>
    %138 = arith.maximumf %136, %137 : vector<16x1xf32>
    %139 = tpu.reciprocal %138 : vector<16x1xf32> -> vector<16x1xf32>
    %140 = vector.broadcast %139 : vector<16x1xf32> to vector<16x128xf32>
    %141 = arith.mulf %128, %140 : vector<16x128xf32>
    %142 = arith.mulf %141, %141 : vector<16x128xf32>
    %cst_50 = arith.constant dense<0.000000e+00> : vector<16xf32>
    %143 = vector.multi_reduction <add>, %142, %cst_50 [1] : vector<16x128xf32> to vector<16xf32>
    %144 = vector.shape_cast %143 : vector<16xf32> to vector<16x1xf32>
    %145 = math.sqrt %144 : vector<16x1xf32>
    %cst_51 = arith.constant 1.000000e-15 : f32
    %146 = vector.broadcast %cst_51 : f32 to vector<16x1xf32>
    %147 = arith.maximumf %145, %146 : vector<16x1xf32>
    %cst_52 = arith.constant 0.995999991 : f32
    %148 = vector.broadcast %cst_52 : f32 to vector<16x1xf32>
    %149 = arith.cmpf ogt, %147, %148 : vector<16x1xf32>
    %150 = tpu.reciprocal %147 : vector<16x1xf32> -> vector<16x1xf32>
    %cst_53 = arith.constant 0.995999991 : f32
    %151 = vector.broadcast %cst_53 : f32 to vector<16x1xf32>
    %152 = arith.mulf %151, %150 : vector<16x1xf32>
    %cst_54 = arith.constant 1.000000e+00 : f32
    %153 = vector.broadcast %cst_54 : f32 to vector<16x1xf32>
    %154 = arith.select %149, %152, %153 : vector<16x1xi1>, vector<16x1xf32>
    %155 = vector.broadcast %154 : vector<16x1xf32> to vector<16x128xf32>
    %156 = arith.mulf %141, %155 : vector<16x128xf32>
    %c0_55 = arith.constant 0 : index
    %c0_56 = arith.constant 0 : index
    %157 = vector.load %arg6[%c0_55, %c0_56] : memref<16x128xf32, #tpu.memory_space<vmem>>, vector<16x128xf32>
    tpu.vector_store %arg6[%c0_55, %c0_56], %156 {strides = array<i32>} : memref<16x128xf32, #tpu.memory_space<vmem>>, vector<16x128xf32>,
    return
  }
  func.func @transform_0(%arg0: i32) -> (i32, i32) {
    %c0_i32 = arith.constant 0 : i32
    %c0_i32_0 = arith.constant 0 : i32
    return %arg0, %c0_i32 : i32, i32
  }
  func.func @transform_1(%arg0: i32) -> (i32, i32) {
    %c0_i32 = arith.constant 0 : i32
    %c0_i32_0 = arith.constant 0 : i32
    return %arg0, %c0_i32 : i32, i32
  }
  func.func @transform_2(%arg0: i32) -> (i32, i32) {
    %c0_i32 = arith.constant 0 : i32
    %c0_i32_0 = arith.constant 0 : i32
    %c0_i32_1 = arith.constant 0 : i32
    return %c0_i32, %c0_i32_0 : i32, i32
  }
  func.func @transform_3(%arg0: i32) -> (i32, i32) {
    %c0_i32 = arith.constant 0 : i32
    %c0_i32_0 = arith.constant 0 : i32
    %c0_i32_1 = arith.constant 0 : i32
    return %c0_i32, %c0_i32_0 : i32, i32
  }
  func.func @transform_4(%arg0: i32) -> (i32, i32) {
    %c0_i32 = arith.constant 0 : i32
    %c0_i32_0 = arith.constant 0 : i32
    %c0_i32_1 = arith.constant 0 : i32
    return %c0_i32, %c0_i32_0 : i32, i32
  }
  func.func @transform_5(%arg0: i32) -> (i32, i32) {
    %c0_i32 = arith.constant 0 : i32
    %c0_i32_0 = arith.constant 0 : i32
    return %arg0, %c0_i32 : i32, i32
  }
}

</mosaic_0001>

<llo_original>
// kernel: tpu_custom_call.1
$region0: #{tpu_custom_call.1}
  #allocation0 [shape = 'u32[]', space=smem, size = 0x4, offset = 0x4, fixed_abs, tag = 'smem constant byte address 0x4 - core index']
  #allocation1 [shape = 'u32[72,128]{1,0:T(1,128)}', space=vmem, size = 0x9000, scoped, tag = 'internal scratch']
  #allocation2 [shape = 'f32[1,1]{1,0:T(1,128)S(6)}', space=smem, size = 0x200, scoped, tag = 'scoped memory for tpu_custom_call.1']
  %s0 = inlined_call_operand.hbm [shape: f32[16,128], index: 0, kind: input, shape index: {}]
  %s1 = inlined_call_operand.hbm [shape: f32[16,128], index: 1, kind: input, shape index: {}]
  %s2 = inlined_call_operand.hbm [shape: f32[128,128], index: 2, kind: input, shape index: {}]
  %s3 = inlined_call_operand.vmem [shape: f32[1,128], index: 3, kind: input, shape index: {}]
  %s4 = inlined_call_operand.<no memory space> [shape: f32[1,1], index: 4, kind: input, shape index: {}]
  %s5 = inlined_call_operand.hbm [shape: f32[16,128], index: 5, kind: output, shape index: {}]
  %s6 = sld [smem:[#allocation0]]
  $region42: #{tpu_custom_call.1} parent=0
    _
  %s8 = ssub.s32 1, %s6
  %s9 = scalar_select 0, %s8, %s6
  %10 = sst [smem:[#allocation2]] %s4
  $region1: #{tpu_custom_call.1} parent=0
    #allocation3 [shape = 'u8[8192]{0}', space=vmem, size = 0x2000, scoped, tag = 'input window, operand 0, single buffered']
    #allocation4 [shape = 's32[1]{0}', space=sflag, size = 0x4, scoped, tag = 'scoped memory for tpu_custom_call.1']
    #allocation5 [shape = 's32[1]{0}', space=sflag, size = 0x4, scoped, tag = 'scoped memory for tpu_custom_call.1']
    #allocation6 [shape = 'u8[8192]{0}', space=vmem, size = 0x2000, scoped, tag = 'input window, operand 1, single buffered']
    #allocation7 [shape = 's32[1]{0}', space=sflag, size = 0x4, scoped, tag = 'scoped memory for tpu_custom_call.1']
    #allocation8 [shape = 'u8[65536]{0}', space=vmem, size = 0x10000, scoped, tag = 'input window, operand 2, single buffered']
    #allocation9 [shape = 'u8[8192]{0}', space=vmem, size = 0x2000, scoped, tag = 'output window, operand 0, single buffered']
    %11 = vsyncpa [#allocation4], 0
    %12 = vsyncpa [#allocation7], 0
    %13 = vsyncpa [#allocation5], 0
    // Predicated region
    $region2: #{tpu_custom_call.1} parent=1 // pred_check
      _
    $region3: #{tpu_custom_call.1} parent=1 // pred_check_branch
      %15 = sbr.rel (0) target = $region5
    $region4: #{tpu_custom_call.1} parent=1 // pred_region
      %17 = vsyncadd [#allocation4], 0
      %s18 = sshll.u32 %s0, 4
      %s19 = int_to_ptr.hbm [resolvable:$true] %s18
      %s20 = sshll.u32 [#allocation3], 4
      %s21 = int_to_ptr.vmem [resolvable:$true] %s20
      %26 = dma.hbm_to_vmem [thread:$0]  %s19, 256, %s21, [#allocation4], 128, 128, 8
    $region5: #{tpu_custom_call.1} parent=1 // pred_fallthru
      _
    // Predicated region
    $region6: #{tpu_custom_call.1} parent=1 // pred_check
      _
    $region7: #{tpu_custom_call.1} parent=1 // pred_check_branch
      %28 = sbr.rel (0) target = $region9
    $region8: #{tpu_custom_call.1} parent=1 // pred_region
      %30 = vsyncadd [#allocation7], 0
      %s31 = sshll.u32 %s1, 4
      %s32 = int_to_ptr.hbm [resolvable:$true] %s31
      %s33 = sshll.u32 [#allocation6], 4
      %s34 = int_to_ptr.vmem [resolvable:$true] %s33
      %39 = dma.hbm_to_vmem [thread:$0]  %s32, 256, %s34, [#allocation7], 128, 128, 8
    $region9: #{tpu_custom_call.1} parent=1 // pred_fallthru
      _
    // Predicated region
    $region10: #{tpu_custom_call.1} parent=1 // pred_check
      _
    $region11: #{tpu_custom_call.1} parent=1 // pred_check_branch
      %41 = sbr.rel (0) target = $region13
    $region12: #{tpu_custom_call.1} parent=1 // pred_region
      %43 = vsyncadd [#allocation7], 0
      %s44 = sshll.u32 %s2, 4
      %s45 = int_to_ptr.hbm [resolvable:$true] %s44
      %s46 = sshll.u32 [#allocation8], 4
      %s47 = int_to_ptr.vmem [resolvable:$true] %s46
      %52 = dma.hbm_to_vmem [thread:$0]  %s45, 2048, %s47, [#allocation7], 128, 128, 8
    $region13: #{tpu_custom_call.1} parent=1 // pred_fallthru
      _
    // Predicated region
    $region14: #{tpu_custom_call.1} parent=1 // pred_check
      _
    $region15: #{tpu_custom_call.1} parent=1 // pred_check_branch
      %54 = sbr.rel (0) target = $region17
    $region16: #{tpu_custom_call.1} parent=1 // pred_region
      _
    $region17: #{tpu_custom_call.1} parent=1 // pred_fallthru
      _
    // Predicated region
    $region18: #{tpu_custom_call.1} parent=1 // pred_check
      _
    $region19: #{tpu_custom_call.1} parent=1 // pred_check_branch
      %56 = sbr.rel (0) target = $region21
    $region20: #{tpu_custom_call.1} parent=1 // pred_region
      _
    $region21: #{tpu_custom_call.1} parent=1 // pred_fallthru
      _
    // Predicated region
    $region22: #{tpu_custom_call.1} parent=1 // pred_check
      _
    $region23: #{tpu_custom_call.1} parent=1 // pred_check_branch
      %58 = sbr.rel (0) target = $region25
    $region24: #{tpu_custom_call.1} parent=1 // pred_region
      %60 = dma.done [#allocation4], 256
    $region25: #{tpu_custom_call.1} parent=1 // pred_fallthru
      _
    // Predicated region
    $region26: #{tpu_custom_call.1} parent=1 // pred_check
      _
    $region27: #{tpu_custom_call.1} parent=1 // pred_check_branch
      %62 = sbr.rel (0) target = $region29
    $region28: #{tpu_custom_call.1} parent=1 // pred_region
      %64 = dma.done [#allocation7], 256
    $region29: #{tpu_custom_call.1} parent=1 // pred_fallthru
      _
    // Predicated region
    $region30: #{tpu_custom_call.1} parent=1 // pred_check
      _
    $region31: #{tpu_custom_call.1} parent=1 // pred_check_branch
      %66 = sbr.rel (0) target = $region33
    $region32: #{tpu_custom_call.1} parent=1 // pred_region
      %68 = dma.done [#allocation7], 2048
    $region33: #{tpu_custom_call.1} parent=1 // pred_fallthru
      _
    %v69 = vld [vmem:[#allocation3] sm:$0xff]
    %v70 = vld [vmem:[#allocation3 + $0x8] sm:$0xff]
    %v71 = vld [vmem:[#allocation8] sm:$0xff]
    %v72 = vld [vmem:[#allocation8 + $0x8] sm:$0xff]
    %v73 = vld [vmem:[#allocation8 + $0x10] sm:$0xff]
    %v74 = vld [vmem:[#allocation8 + $0x18] sm:$0xff]
    %v75 = vld [vmem:[#allocation8 + $0x20] sm:$0xff]
    %v76 = vld [vmem:[#allocation8 + $0x28] sm:$0xff]
    %v77 = vld [vmem:[#allocation8 + $0x30] sm:$0xff]
    %v78 = vld [vmem:[#allocation8 + $0x38] sm:$0xff]
    %v79 = vld [vmem:[#allocation8 + $0x40] sm:$0xff]
    %v80 = vld [vmem:[#allocation8 + $0x48] sm:$0xff]
    %v81 = vld [vmem:[#allocation8 + $0x50] sm:$0xff]
    %v82 = vld [vmem:[#allocation8 + $0x58] sm:$0xff]
    %v83 = vld [vmem:[#allocation8 + $0x60] sm:$0xff]
    %v84 = vld [vmem:[#allocation8 + $0x68] sm:$0xff]
    %v85 = vld [vmem:[#allocation8 + $0x70] sm:$0xff]
    %v86 = vld [vmem:[#allocation8 + $0x78] sm:$0xff]
    %87 = vmatpush.msra.mxu0 %v86
    %88 = vmatpush.msra.mxu0 %v85
    %89 = vmatpush.msra.mxu0 %v84
    %90 = vmatpush.msra.mxu0 %v83
    %91 = vmatpush.msra.mxu0 %v82
    %92 = vmatpush.msra.mxu0 %v81
    %93 = vmatpush.msra.mxu0 %v80
    %94 = vmatpush.msra.mxu0 %v79
    %95 = vmatpush.msra.mxu0 %v78
    %96 = vmatpush.msra.mxu0 %v77
    %97 = vmatpush.msra.mxu0 %v76
    %98 = vmatpush.msra.mxu0 %v75
    %99 = vmatpush.msra.mxu0 %v74
    %100 = vmatpush.msra.mxu0 %v73
    %101 = vmatpush.msra.mxu0 %v72
    %102 = vmatpush.msra.mxu0 %v71
    %103 = vmatmul.f32.gmra.mxu0 %v69
    %v104 = vpop.f32.mrf.mxu0
    %v105 = vadd.f32 0.0, %v104
    %106 = vmatmul.f32.gmra.mxu0 %v70
    %v107 = vpop.f32.mrf.mxu0
    %v108 = vadd.f32 0.0, %v107
    %109 = vdwg.mxu0
    %v110 = vmul.f32 %v69, %v69
    %v111 = vmul.f32 %v70, %v70
    %112 = vadd.xlane.f32.xlu0 %v110
    %v113 = vpop.xlane.xlu0 %112
    %114 = vadd.xlane.f32.xlu0 %v111
    %v115 = vpop.xlane.xlu0 %114
    %v116 = vld [vmem:[#allocation6] sm:$0xff]
    %v117 = vld [vmem:[#allocation6 + $0x8] sm:$0xff]
    %v118 = vld [vmem:[%s3] sm:$0x1]
    %s119 = sld [smem:[#allocation2]]
    %v120 = vrsqrt.pop %v113
    %v121 = vmul.f32 %v120, %v113
    %v122 = vmul.f32 %v121, %v120
    %v123 = vmul.f32 0.5, %v122
    %v124 = vsub.f32 1.5, %v123
    %v125 = vmul.f32 %v120, %v124
    %v126 = vmul.f32 %v113, %v125
    %vm127 = vcmp.eq.f32.partialorder %v113, inf
    %v128 = vsel %vm127, %v113, %v126
    %vm129 = vcmp.eq.f32.partialorder %v113, 0.0
    %v130 = vand.u32 %v113, 2147483648
    %v131 = vsel %vm129, %v130, %v128
    %v132 = vrsqrt.pop %v115
    %v133 = vmul.f32 %v132, %v115
    %v134 = vmul.f32 %v133, %v132
    %v135 = vmul.f32 0.5, %v134
    %v136 = vsub.f32 1.5, %v135
    %v137 = vmul.f32 %v132, %v136
    %v138 = vmul.f32 %v115, %v137
    %vm139 = vcmp.eq.f32.partialorder %v115, inf
    %v140 = vsel %vm139, %v115, %v138
    %vm141 = vcmp.eq.f32.partialorder %v115, 0.0
    %v142 = vand.u32 %v115, 2147483648
    %v143 = vsel %vm141, %v142, %v140
    %v144 = vmax.f32 %v131, 1e-15
    %v145 = vmax.f32 %v143, 1e-15
    %v146 = vmul.f32 %v105, %v105
    %v147 = vmul.f32 %v108, %v108
    %148 = vadd.xlane.f32.xlu0 %v146
    %v149 = vpop.xlane.xlu0 %148
    %150 = vadd.xlane.f32.xlu0 %v147
    %v151 = vpop.xlane.xlu0 %150
    %v152 = vrsqrt.pop %v149
    %v153 = vmul.f32 %v152, %v149
    %v154 = vmul.f32 %v153, %v152
    %v155 = vmul.f32 0.5, %v154
    %v156 = vsub.f32 1.5, %v155
    %v157 = vmul.f32 %v152, %v156
    %v158 = vmul.f32 %v149, %v157
    %vm159 = vcmp.eq.f32.partialorder %v149, inf
    %v160 = vsel %vm159, %v149, %v158
    %vm161 = vcmp.eq.f32.partialorder %v149, 0.0
    %v162 = vand.u32 %v149, 2147483648
    %v163 = vsel %vm161, %v162, %v160
    %v164 = vrsqrt.pop %v151
    %v165 = vmul.f32 %v164, %v151
    %v166 = vmul.f32 %v165, %v164
    %v167 = vmul.f32 0.5, %v166
    %v168 = vsub.f32 1.5, %v167
    %v169 = vmul.f32 %v164, %v168
    %v170 = vmul.f32 %v151, %v169
    %vm171 = vcmp.eq.f32.partialorder %v151, inf
    %v172 = vsel %vm171, %v151, %v170
    %vm173 = vcmp.eq.f32.partialorder %v151, 0.0
    %v174 = vand.u32 %v151, 2147483648
    %v175 = vsel %vm173, %v174, %v172
    %v176 = vmax.f32 %v163, 1e-15
    %v177 = vmax.f32 %v175, 1e-15
    %v178 = vrcp.pop %v144
    %v179 = vmul.f32 %v144, %v178
    %v180 = vsub.f32 1.0, %v179
    %v181 = vmul.f32 %v178, %v180
    %v182 = vadd.f32 %v178, %v181
    %vm183 = vweird.f32 %v144
    %vm184 = vweird.f32 %v178
    %vm185 = vmor %vm183, %vm184
    %v186 = vsel %vm185, %v178, %v182
    %v187 = vand.u32 2147483647, %v144
    %vm188 = vcmp.eq.f32.partialorder %v187, 8.507059e+37
    %v189 = vand.u32 %v144, 2147483648
    %v190 = vor.u32 1.1754944e-38, %v189
    %v191 = vsel %vm188, %v190, %v186
    %v192 = vrcp.pop %v145
    %v193 = vmul.f32 %v145, %v192
    %v194 = vsub.f32 1.0, %v193
    %v195 = vmul.f32 %v192, %v194
    %v196 = vadd.f32 %v192, %v195
    %vm197 = vweird.f32 %v145
    %vm198 = vweird.f32 %v192
    %vm199 = vmor %vm197, %vm198
    %v200 = vsel %vm199, %v192, %v196
    %v201 = vand.u32 2147483647, %v145
    %vm202 = vcmp.eq.f32.partialorder %v201, 8.507059e+37
    %v203 = vand.u32 %v145, 2147483648
    %v204 = vor.u32 1.1754944e-38, %v203
    %v205 = vsel %vm202, %v204, %v200
    %v206 = vmul.f32 %v176, %v191
    %v207 = vmul.f32 %v177, %v205
    %v208 = vmax.f32 %v144, -0.9999999
    %v209 = vmax.f32 %v145, -0.9999999
    %v210 = vmin.f32 %v208, 0.9999999
    %v211 = vmin.f32 %v209, 0.9999999
    %v212 = vadd.f32 %v210, 1.0
    %v213 = vadd.f32 %v211, 1.0
    %v214 = vsub.f32 1.0, %v210
    %v215 = vsub.f32 1.0, %v211
    %v216 = vrcp.pop %v214
    %v217 = vmul.f32 %v214, %v216
    %v218 = vsub.f32 1.0, %v217
    %v219 = vmul.f32 %v216, %v218
    %v220 = vadd.f32 %v216, %v219
    %vm221 = vweird.f32 %v214
    %vm222 = vweird.f32 %v216
    %vm223 = vmor %vm221, %vm222
    %v224 = vsel %vm223, %v216, %v220
    %v225 = vand.u32 2147483647, %v214
    %vm226 = vcmp.eq.f32.partialorder %v225, 8.507059e+37
    %v227 = vand.u32 %v214, 2147483648
    %v228 = vor.u32 1.1754944e-38, %v227
    %v229 = vsel %vm226, %v228, %v224
    %v230 = vmul.f32 %v212, %v229
    %v231 = vrcp.pop %v215
    %v232 = vmul.f32 %v215, %v231
    %v233 = vsub.f32 1.0, %v232
    %v234 = vmul.f32 %v231, %v233
    %v235 = vadd.f32 %v231, %v234
    %vm236 = vweird.f32 %v215
    %vm237 = vweird.f32 %v231
    %vm238 = vmor %vm236, %vm237
    %v239 = vsel %vm238, %v231, %v235
    %v240 = vand.u32 2147483647, %v215
    %vm241 = vcmp.eq.f32.partialorder %v240, 8.507059e+37
    %v242 = vand.u32 %v215, 2147483648
    %v243 = vor.u32 1.1754944e-38, %v242
    %v244 = vsel %vm241, %v243, %v239
    %v245 = vmul.f32 %v213, %v244
    %v246 = vlog2.pop %v230
    %v247 = vmul.f32 %v246, 0.6931472
    %v248 = vlog2.pop %v245
    %v249 = vmul.f32 %v248, 0.6931472
    %v250 = vmul.f32 %v247, 0.5
    %v251 = vmul.f32 %v249, 0.5
    %v252 = vmul.f32 %v206, %v250
    %v253 = vmul.f32 %v207, %v251
    %v254 = vtanh.pop %v252
    %v255 = vtanh.pop %v253
    %v256 = vrcp.pop %v176
    %v257 = vmul.f32 %v176, %v256
    %v258 = vsub.f32 1.0, %v257
    %v259 = vmul.f32 %v256, %v258
    %v260 = vadd.f32 %v256, %v259
    %vm261 = vweird.f32 %v176
    %vm262 = vweird.f32 %v256
    %vm263 = vmor %vm261, %vm262
    %v264 = vsel %vm263, %v256, %v260
    %v265 = vand.u32 2147483647, %v176
    %vm266 = vcmp.eq.f32.partialorder %v265, 8.507059e+37
    %v267 = vand.u32 %v176, 2147483648
    %v268 = vor.u32 1.1754944e-38, %v267
    %v269 = vsel %vm266, %v268, %v264
    %v270 = vrcp.pop %v177
    %v271 = vmul.f32 %v177, %v270
    %v272 = vsub.f32 1.0, %v271
    %v273 = vmul.f32 %v270, %v272
    %v274 = vadd.f32 %v270, %v273
    %vm275 = vweird.f32 %v177
    %vm276 = vweird.f32 %v270
    %vm277 = vmor %vm275, %vm276
    %v278 = vsel %vm277, %v270, %v274
    %v279 = vand.u32 2147483647, %v177
    %vm280 = vcmp.eq.f32.partialorder %v279, 8.507059e+37
    %v281 = vand.u32 %v177, 2147483648
    %v282 = vor.u32 1.1754944e-38, %v281
    %v283 = vsel %vm280, %v282, %v278
    %v284 = vmul.f32 %v254, %v269
    %v285 = vmul.f32 %v255, %v283
    %v286 = vmul.f32 %v284, %v176
    %v287 = vmul.f32 %v285, %v177
    %vm288 = vcmp.gt.f32.partialorder %v286, 0.996
    %vm289 = vcmp.gt.f32.partialorder %v287, 0.996
    %v290 = vmax.f32 %v286, 1e-15
    %v291 = vmax.f32 %v287, 1e-15
    %v292 = vrcp.pop %v290
    %v293 = vmul.f32 %v290, %v292
    %v294 = vsub.f32 1.0, %v293
    %v295 = vmul.f32 %v292, %v294
    %v296 = vadd.f32 %v292, %v295
    %vm297 = vweird.f32 %v290
    %vm298 = vweird.f32 %v292
    %vm299 = vmor %vm297, %vm298
    %v300 = vsel %vm299, %v292, %v296
    %v301 = vand.u32 2147483647, %v290
    %vm302 = vcmp.eq.f32.partialorder %v301, 8.507059e+37
    %v303 = vand.u32 %v290, 2147483648
    %v304 = vor.u32 1.1754944e-38, %v303
    %v305 = vsel %vm302, %v304, %v300
    %v306 = vrcp.pop %v291
    %v307 = vmul.f32 %v291, %v306
    %v308 = vsub.f32 1.0, %v307
    %v309 = vmul.f32 %v306, %v308
    %v310 = vadd.f32 %v306, %v309
    %vm311 = vweird.f32 %v291
    %vm312 = vweird.f32 %v306
    %vm313 = vmor %vm311, %vm312
    %v314 = vsel %vm313, %v306, %v310
    %v315 = vand.u32 2147483647, %v291
    %vm316 = vcmp.eq.f32.partialorder %v315, 8.507059e+37
    %v317 = vand.u32 %v291, 2147483648
    %v318 = vor.u32 1.1754944e-38, %v317
    %v319 = vsel %vm316, %v318, %v314
    %v320 = vmul.f32 %v305, 0.996
    %v321 = vmul.f32 %v319, 0.996
    %v322 = vsel %vm288, %v320, 1.0
    %v323 = vsel %vm289, %v321, 1.0
    %v324 = vmul.f32 %v284, %v322
    %v325 = vmul.f32 %v285, %v323
    %v326 = vmul.f32 %v105, %v324
    %v327 = vmul.f32 %v108, %v325
    %v328 = vmul.f32 %v286, %v322
    %v329 = vmul.f32 %v287, %v323
    %v330 = vmul.f32 %v328, %v328
    %v331 = vmul.f32 %v329, %v329
    %v333 = vperm.slane %v118, 0
    %v335 = vmul.f32 %v326, %v333
    %v336 = vmul.f32 %v327, %v333
    %337 = vadd.xlane.f32.xlu0 %v335
    %v338 = vpop.xlane.xlu0 %337
    %339 = vadd.xlane.f32.xlu0 %v336
    %v340 = vpop.xlane.xlu0 %339
    %v341 = vmul.f32 %v338, 2.0
    %v342 = vmul.f32 %v340, 2.0
    %v343 = vadd.f32 %v341, 1.0
    %v344 = vadd.f32 %v342, 1.0
    %v345 = vstv %s119
    %v346 = vadd.f32 %v343, %v345
    %v347 = vadd.f32 %v344, %v345
    %v348 = vmul.f32 %v346, %v326
    %v349 = vmul.f32 %v347, %v327
    %v350 = vsub.f32 1.0, %v330
    %v351 = vsub.f32 1.0, %v331
    %v352 = vmul.f32 %v350, %v333
    %v353 = vmul.f32 %v351, %v333
    %v354 = vadd.f32 %v348, %v352
    %v355 = vadd.f32 %v349, %v353
    %v356 = vmul.f32 %v330, %v345
    %v357 = vmul.f32 %v331, %v345
    %v358 = vadd.f32 %v343, %v356
    %v359 = vadd.f32 %v344, %v357
    %v360 = vmax.f32 %v358, 1e-15
    %v361 = vmax.f32 %v359, 1e-15
    %v362 = vrcp.pop %v360
    %v363 = vmul.f32 %v360, %v362
    %v364 = vsub.f32 1.0, %v363
    %v365 = vmul.f32 %v362, %v364
    %v366 = vadd.f32 %v362, %v365
    %vm367 = vweird.f32 %v360
    %vm368 = vweird.f32 %v362
    %vm369 = vmor %vm367, %vm368
    %v370 = vsel %vm369, %v362, %v366
    %v371 = vand.u32 2147483647, %v360
    %vm372 = vcmp.eq.f32.partialorder %v371, 8.507059e+37
    %v373 = vand.u32 %v360, 2147483648
    %v374 = vor.u32 1.1754944e-38, %v373
    %v375 = vsel %vm372, %v374, %v370
    %v376 = vrcp.pop %v361
    %v377 = vmul.f32 %v361, %v376
    %v378 = vsub.f32 1.0, %v377
    %v379 = vmul.f32 %v376, %v378
    %v380 = vadd.f32 %v376, %v379
    %vm381 = vweird.f32 %v361
    %vm382 = vweird.f32 %v376
    %vm383 = vmor %vm381, %vm382
    %v384 = vsel %vm383, %v376, %v380
    %v385 = vand.u32 2147483647, %v361
    %vm386 = vcmp.eq.f32.partialorder %v385, 8.507059e+37
    %v387 = vand.u32 %v361, 2147483648
    %v388 = vor.u32 1.1754944e-38, %v387
    %v389 = vsel %vm386, %v388, %v384
    %v390 = vmul.f32 %v354, %v375
    %v391 = vmul.f32 %v355, %v389
    %v392 = vmul.f32 %v390, %v390
    %v393 = vmul.f32 %v391, %v391
    %394 = vadd.xlane.f32.xlu0 %v392
    %v395 = vpop.xlane.xlu0 %394
    %396 = vadd.xlane.f32.xlu0 %v393
    %v397 = vpop.xlane.xlu0 %396
    %v398 = vrsqrt.pop %v395
    %v399 = vmul.f32 %v398, %v395
    %v400 = vmul.f32 %v399, %v398
    %v401 = vmul.f32 0.5, %v400
    %v402 = vsub.f32 1.5, %v401
    %v403 = vmul.f32 %v398, %v402
    %v404 = vmul.f32 %v395, %v403
    %vm405 = vcmp.eq.f32.partialorder %v395, inf
    %v406 = vsel %vm405, %v395, %v404
    %vm407 = vcmp.eq.f32.partialorder %v395, 0.0
    %v408 = vand.u32 %v395, 2147483648
    %v409 = vsel %vm407, %v408, %v406
    %v410 = vrsqrt.pop %v397
    %v411 = vmul.f32 %v410, %v397
    %v412 = vmul.f32 %v411, %v410
    %v413 = vmul.f32 0.5, %v412
    %v414 = vsub.f32 1.5, %v413
    %v415 = vmul.f32 %v410, %v414
    %v416 = vmul.f32 %v397, %v415
    %vm417 = vcmp.eq.f32.partialorder %v397, inf
    %v418 = vsel %vm417, %v397, %v416
    %vm419 = vcmp.eq.f32.partialorder %v397, 0.0
    %v420 = vand.u32 %v397, 2147483648
    %v421 = vsel %vm419, %v420, %v418
    %v422 = vmax.f32 %v409, 1e-15
    %v423 = vmax.f32 %v421, 1e-15
    %vm424 = vcmp.gt.f32.partialorder %v422, 0.996
    %vm425 = vcmp.gt.f32.partialorder %v423, 0.996
    %v426 = vrcp.pop %v422
    %v427 = vmul.f32 %v422, %v426
    %v428 = vsub.f32 1.0, %v427
    %v429 = vmul.f32 %v426, %v428
    %v430 = vadd.f32 %v426, %v429
    %vm431 = vweird.f32 %v422
    %vm432 = vweird.f32 %v426
    %vm433 = vmor %vm431, %vm432
    %v434 = vsel %vm433, %v426, %v430
    %v435 = vand.u32 2147483647, %v422
    %vm436 = vcmp.eq.f32.partialorder %v435, 8.507059e+37
    %v437 = vand.u32 %v422, 2147483648
    %v438 = vor.u32 1.1754944e-38, %v437
    %v439 = vsel %vm436, %v438, %v434
    %v440 = vrcp.pop %v423
    %v441 = vmul.f32 %v423, %v440
    %v442 = vsub.f32 1.0, %v441
    %v443 = vmul.f32 %v440, %v442
    %v444 = vadd.f32 %v440, %v443
    %vm445 = vweird.f32 %v423
    %vm446 = vweird.f32 %v440
    %vm447 = vmor %vm445, %vm446
    %v448 = vsel %vm447, %v440, %v444
    %v449 = vand.u32 2147483647, %v423
    %vm450 = vcmp.eq.f32.partialorder %v449, 8.507059e+37
    %v451 = vand.u32 %v423, 2147483648
    %v452 = vor.u32 1.1754944e-38, %v451
    %v453 = vsel %vm450, %v452, %v448
    %v454 = vmul.f32 %v439, 0.996
    %v455 = vmul.f32 %v453, 0.996
    %v456 = vsel %vm424, %v454, 1.0
    %v457 = vsel %vm425, %v455, 1.0
    %v458 = vmul.f32 %v390, %v456
    %v459 = vmul.f32 %v391, %v457
    %v460 = vmul.f32 %v395, %v456
    %v461 = vmul.f32 %v397, %v457
    %v462 = vmul.f32 %v460, %v456
    %v463 = vmul.f32 %v461, %v457
    %v464 = vmul.f32 %v116, %v116
    %v465 = vmul.f32 %v117, %v117
    %466 = vadd.xlane.f32.xlu0 %v464
    %v467 = vpop.xlane.xlu0 %466
    %468 = vadd.xlane.f32.xlu0 %v465
    %v469 = vpop.xlane.xlu0 %468
    %v470 = vmul.f32 %v116, %v458
    %v471 = vmul.f32 %v117, %v459
    %472 = vadd.xlane.f32.xlu0 %v470
    %v473 = vpop.xlane.xlu0 %472
    %474 = vadd.xlane.f32.xlu0 %v471
    %v475 = vpop.xlane.xlu0 %474
    %v476 = vmul.f32 %v473, 2.0
    %v477 = vmul.f32 %v475, 2.0
    %v478 = vadd.f32 %v476, 1.0
    %v479 = vadd.f32 %v477, 1.0
    %v480 = vadd.f32 %v478, %v462
    %v481 = vadd.f32 %v479, %v463
    %v482 = vmul.f32 %v480, %v116
    %v483 = vmul.f32 %v481, %v117
    %v484 = vsub.f32 1.0, %v467
    %v485 = vsub.f32 1.0, %v469
    %v486 = vmul.f32 %v484, %v458
    %v487 = vmul.f32 %v485, %v459
    %v488 = vadd.f32 %v482, %v486
    %v489 = vadd.f32 %v483, %v487
    %v490 = vmul.f32 %v467, %v462
    %v491 = vmul.f32 %v469, %v463
    %v492 = vadd.f32 %v478, %v490
    %v493 = vadd.f32 %v479, %v491
    %v494 = vmax.f32 %v492, 1e-15
    %v495 = vmax.f32 %v493, 1e-15
    %v496 = vrcp.pop %v494
    %v497 = vmul.f32 %v494, %v496
    %v498 = vsub.f32 1.0, %v497
    %v499 = vmul.f32 %v496, %v498
    %v500 = vadd.f32 %v496, %v499
    %vm501 = vweird.f32 %v494
    %vm502 = vweird.f32 %v496
    %vm503 = vmor %vm501, %vm502
    %v504 = vsel %vm503, %v496, %v500
    %v505 = vand.u32 2147483647, %v494
    %vm506 = vcmp.eq.f32.partialorder %v505, 8.507059e+37
    %v507 = vand.u32 %v494, 2147483648
    %v508 = vor.u32 1.1754944e-38, %v507
    %v509 = vsel %vm506, %v508, %v504
    %v510 = vrcp.pop %v495
    %v511 = vmul.f32 %v495, %v510
    %v512 = vsub.f32 1.0, %v511
    %v513 = vmul.f32 %v510, %v512
    %v514 = vadd.f32 %v510, %v513
    %vm515 = vweird.f32 %v495
    %vm516 = vweird.f32 %v510
    %vm517 = vmor %vm515, %vm516
    %v518 = vsel %vm517, %v510, %v514
    %v519 = vand.u32 2147483647, %v495
    %vm520 = vcmp.eq.f32.partialorder %v519, 8.507059e+37
    %v521 = vand.u32 %v495, 2147483648
    %v522 = vor.u32 1.1754944e-38, %v521
    %v523 = vsel %vm520, %v522, %v518
    %v524 = vmul.f32 %v488, %v509
    %v525 = vmul.f32 %v489, %v523
    %v526 = vmul.f32 %v524, %v524
    %v527 = vmul.f32 %v525, %v525
    %528 = vadd.xlane.f32.xlu0 %v526
    %v529 = vpop.xlane.xlu0 %528
    %530 = vadd.xlane.f32.xlu0 %v527
    %v531 = vpop.xlane.xlu0 %530
    %v532 = vrsqrt.pop %v529
    %v533 = vmul.f32 %v532, %v529
    %v534 = vmul.f32 %v533, %v532
    %v535 = vmul.f32 0.5, %v534
    %v536 = vsub.f32 1.5, %v535
    %v537 = vmul.f32 %v532, %v536
    %v538 = vmul.f32 %v529, %v537
    %vm539 = vcmp.eq.f32.partialorder %v529, inf
    %v540 = vsel %vm539, %v529, %v538
    %vm541 = vcmp.eq.f32.partialorder %v529, 0.0
    %v542 = vand.u32 %v529, 2147483648
    %v543 = vsel %vm541, %v542, %v540
    %v544 = vrsqrt.pop %v531
    %v545 = vmul.f32 %v544, %v531
    %v546 = vmul.f32 %v545, %v544
    %v547 = vmul.f32 0.5, %v546
    %v548 = vsub.f32 1.5, %v547
    %v549 = vmul.f32 %v544, %v548
    %v550 = vmul.f32 %v531, %v549
    %vm551 = vcmp.eq.f32.partialorder %v531, inf
    %v552 = vsel %vm551, %v531, %v550
    %vm553 = vcmp.eq.f32.partialorder %v531, 0.0
    %v554 = vand.u32 %v531, 2147483648
    %v555 = vsel %vm553, %v554, %v552
    %v556 = vmax.f32 %v543, 1e-15
    %v557 = vmax.f32 %v555, 1e-15
    %vm558 = vcmp.gt.f32.partialorder %v556, 0.996
    %vm559 = vcmp.gt.f32.partialorder %v557, 0.996
    %v560 = vrcp.pop %v556
    %v561 = vmul.f32 %v556, %v560
    %v562 = vsub.f32 1.0, %v561
    %v563 = vmul.f32 %v560, %v562
    %v564 = vadd.f32 %v560, %v563
    %vm565 = vweird.f32 %v556
    %vm566 = vweird.f32 %v560
    %vm567 = vmor %vm565, %vm566
    %v568 = vsel %vm567, %v560, %v564
    %v569 = vand.u32 2147483647, %v556
    %vm570 = vcmp.eq.f32.partialorder %v569, 8.507059e+37
    %v571 = vand.u32 %v556, 2147483648
    %v572 = vor.u32 1.1754944e-38, %v571
    %v573 = vsel %vm570, %v572, %v568
    %v574 = vrcp.pop %v557
    %v575 = vmul.f32 %v557, %v574
    %v576 = vsub.f32 1.0, %v575
    %v577 = vmul.f32 %v574, %v576
    %v578 = vadd.f32 %v574, %v577
    %vm579 = vweird.f32 %v557
    %vm580 = vweird.f32 %v574
    %vm581 = vmor %vm579, %vm580
    %v582 = vsel %vm581, %v574, %v578
    %v583 = vand.u32 2147483647, %v557
    %vm584 = vcmp.eq.f32.partialorder %v583, 8.507059e+37
    %v585 = vand.u32 %v557, 2147483648
    %v586 = vor.u32 1.1754944e-38, %v585
    %v587 = vsel %vm584, %v586, %v582
    %v588 = vmul.f32 %v573, 0.996
    %v589 = vmul.f32 %v587, 0.996
    %v590 = vsel %vm558, %v588, 1.0
    %v591 = vsel %vm559, %v589, 1.0
    %v592 = vmul.f32 %v524, %v590
    %v593 = vmul.f32 %v525, %v591
    %594 = vst [vmem:[#allocation9] sm:$0xff] %v592
    %595 = vst [vmem:[#allocation9 + $0x8] sm:$0xff] %v593
    // Predicated region
    $region34: #{tpu_custom_call.1} parent=1 // pred_check
      _
    $region35: #{tpu_custom_call.1} parent=1 // pred_check_branch
      %597 = sbr.rel (0) target = $region37
    $region36: #{tpu_custom_call.1} parent=1 // pred_region
      %599 = vsyncadd [#allocation5], 0
      %s600 = sshll.u32 [#allocation9], 4
      %s601 = int_to_ptr.vmem [resolvable:$true] %s600
      %s602 = sshll.u32 %s5, 4
      %s603 = int_to_ptr.hbm [resolvable:$true] %s602
      %608 = dma.vmem_to_hbm [thread:$0]  %s601, 256, %s603, [#allocation5], 128, 128, 8
    $region37: #{tpu_custom_call.1} parent=1 // pred_fallthru
      _
    // Predicated region
    $region38: #{tpu_custom_call.1} parent=1 // pred_check
      _
    $region39: #{tpu_custom_call.1} parent=1 // pred_check_branch
      %610 = sbr.rel (0) target = $region41
    $region40: #{tpu_custom_call.1} parent=1 // pred_region
      %612 = dma.done [#allocation5], 256
    $region41: #{tpu_custom_call.1} parent=1 // pred_fallthru
      _
    %613 = vsyncpa [#allocation4], 1
    %614 = vsyncpa [#allocation7], 1
    %615 = vsyncpa [#allocation5], 1

</llo_original>
